<compile_context>
chip_gen: v7x
topology: tpu7x:2x2x1
jax: 0.10.0
libtpu: 0.0.40
codegen_flags: <defaults>
</compile_context>

<pallas_src>
import functools
import math

import jax
import jax.numpy as jnp
from jax.experimental import pallas as pl
from jax.experimental.pallas import tpu as pltpu

LANE = 128


def _round_up(n: int, m: int) -> int:
    return ((n + m - 1) // m) * m


def _sublane(dtype) -> int:
    # dtype-aware sublane multiple: 8 (32-bit), 16 (16-bit), 32 (8-bit) activations.
    return {4: 8, 2: 16, 1: 32}.get(jnp.dtype(dtype).itemsize, 8)


def _vmem_config():
    """Returns (physical per-core VMEM, scoped limit to request, 2-TC hint)."""
    try:
        cap = int(pltpu.get_tpu_info().vmem_capacity_bytes)
    except Exception:  # query unavailable -> assume the most constrained chip (v7x)
        cap = 64 << 20
    limit = min(64 << 20, max(32 << 20, cap // 2))   # 64 MiB on v5e/v6e, 32 MiB on v7x
    two_tc = cap <= (64 << 20)                       # v7x heuristic: 64 MiB VMEM, 2 TCs
    return cap, limit, two_tc


def _mlp_kernel(x_ref, w1_ref, b1_ref, w2_ref, b2_ref, o_ref, acc_ref):
    """One (batch tile, hidden chunk) step of  y = relu(x @ W1 + b1) @ W2 + b2."""
    k = pl.program_id(1)

    @pl.when(k == 0)
    def _init():
        acc_ref[...] = jnp.zeros_like(acc_ref)

    # Cast the LHS of both dots to the weight dtype so bf16 params use the bf16 MXU
    # path on both matmuls; accumulation stays f32 via preferred_element_type.
    x = x_ref[...].astype(w1_ref.dtype)
    h = jnp.dot(x, w1_ref[...], preferred_element_type=jnp.float32)
    h = jnp.maximum(h + b1_ref[...], 0.0)                       # ReLU epilogue in f32
    acc_ref[...] += jnp.dot(h.astype(w2_ref.dtype), w2_ref[...],
                            preferred_element_type=jnp.float32)
    # TODO(synk): if a v5e bundle dump shows vld/vst saturation from spilling the f32
    # hidden slab, process the batch tile in 128-256 row sub-chunks with an unrolled
    # lax.fori_loop here instead of materializing the full [tb, th] f32 `h`.

    @pl.when(k == pl.num_programs(1) - 1)
    def _finalize():
        o_ref[...] = (acc_ref[...] + b2_ref[...]).astype(o_ref.dtype)


def _choose_tiles(B, Fin, H, Fout, act_dtype, par_dtype, hidden_chunk=None):
    """Pick (batch tile, hidden chunk, padded hidden, vmem_limit) from static shapes."""
    act_bytes = jnp.dtype(act_dtype).itemsize
    par_bytes = jnp.dtype(par_dtype).itemsize
    sub = _sublane(act_dtype)
    _, vmem_limit, two_tc = _vmem_config()
    budget = vmem_limit - (4 << 20)              # headroom for compiler-internal scratch

    # Pallas allocates 2 buffers per input even with a constant index_map -> count 2x.
    def weight_bytes(th):
        return 2 * (Fin * th + th * Fout + th + Fout) * par_bytes

    if hidden_chunk is not None:
        th = hidden_chunk
    elif weight_bytes(H) <= budget // 2:
        th = H                                   # weights fully resident, single chunk
    else:
        th = (budget // 2) // (2 * (Fin + Fout + 1) * par_bytes)
        th = max(LANE, (th // LANE) * LANE)
        th = min(th, _round_up(H, LANE))
        # TODO(synk): for Fin/Fout too large even for a 128-wide hidden chunk, add
        # Fin/Fout grid axes as well (K-loop over Fin with a second accumulator).
    h_pad = H if th == H else _round_up(H, th)

    # Batch tile budget: double-buffered x/o blocks + f32 accumulator + f32 hidden.
    per_row = 2 * (Fin + Fout) * act_bytes + Fout * 4 + th * 4
    tb_cap = 512 if two_tc else 1024
    tb_max = max(sub, ((budget - weight_bytes(th)) // per_row) // sub * sub)
    tb_max = min(tb_cap, tb_max)

    b_min = _round_up(B, sub)
    nsteps = max(1, -(-b_min // tb_max))
    if two_tc and b_min >= 2 * sub:
        nsteps = max(nsteps, 2)                  # use both TensorCores on v7x
        nsteps += nsteps % 2                     # even number of steps -> balanced TCs
    tb = max(sub, min(tb_max, _round_up(-(-B // nsteps), sub)))
    return tb, th, h_pad, vmem_limit


def neural_model_forward(x, w1, b1, w2, b2, *, hidden_chunk=None):
    """Mimics NeuralModel.forward(x) == self.model(x) for a Linear-ReLU-Linear model.

    x: [B, Fin]; w1: [Fin, H]; b1: [H] or [1, H]; w2: [H, Fout]; b2: [Fout] or [1, Fout].
    """
    B, Fin = x.shape
    H = w1.shape[1]
    Fout = w2.shape[1]
    b1 = b1.reshape(1, H)
    b2 = b2.reshape(1, Fout)

    if hidden_chunk is not None and hidden_chunk != H:
        assert hidden_chunk % LANE == 0, "hidden_chunk must be a multiple of 128"

    tb, th, h_pad, vmem_limit = _choose_tiles(
        B, Fin, H, Fout, x.dtype, w1.dtype, hidden_chunk=hidden_chunk)

    # Pad the hidden dim only when it is chunked AND ragged (zero padding is exact:
    # relu(0)=0 hits zeroed W2 rows).  These are trace-time guards, so the common case
    # emits no pads at all.  TODO(synk): for repeated calls with a ragged hidden dim,
    # cache the padded params outside the hot path.
    if h_pad != H:
        w1 = jnp.pad(w1, ((0, 0), (0, h_pad - H)))
        b1 = jnp.pad(b1, ((0, 0), (0, h_pad - H)))
        w2 = jnp.pad(w2, ((0, h_pad - H), (0, 0)))

    # Pad the batch only when ragged w.r.t. the tile; padded rows are sliced off below.
    b_pad = _round_up(B, tb)
    x_in = x if b_pad == B else jnp.pad(x, ((0, b_pad - B), (0, 0)))

    grid = (b_pad // tb, h_pad // th)

    out = pl.pallas_call(
        _mlp_kernel,
        out_shape=jax.ShapeDtypeStruct((b_pad, Fout), x.dtype),
        grid_spec=pltpu.PrefetchScalarGridSpec(
            num_scalar_prefetch=0,
            grid=grid,
            in_specs=[
                pl.BlockSpec((tb, Fin), lambda i, k: (i, 0)),    # x: batch-tiled
                pl.BlockSpec((Fin, th), lambda i, k: (0, k)),    # W1: hidden-chunked
                pl.BlockSpec((1, th), lambda i, k: (0, k)),      # b1: hidden-chunked
                pl.BlockSpec((th, Fout), lambda i, k: (k, 0)),   # W2: hidden-chunked
                pl.BlockSpec((1, Fout), lambda i, k: (0, 0)),    # b2: resident
            ],
            out_specs=pl.BlockSpec((tb, Fout), lambda i, k: (i, 0)),
            scratch_shapes=[pltpu.VMEM((tb, Fout), jnp.float32)],  # f32 accumulator
        ),
        compiler_params=pltpu.CompilerParams(
            dimension_semantics=("parallel", "arbitrary"),  # batch || , hidden reduction
            vmem_limit_bytes=int(vmem_limit),
        ),
    )(x_in, w1, b1, w2, b2)

    return out if b_pad == B else out[:B]


def _init_params(key, fin, hidden, fout, dtype=jnp.float32):
    """Deterministic parameter init (PyTorch Linear-style uniform bounds)."""
    k1, k2, k3, k4 = jax.random.split(key, 4)
    lim1 = 1.0 / math.sqrt(fin)
    lim2 = 1.0 / math.sqrt(hidden)
    w1 = jax.random.uniform(k1, (fin, hidden), dtype, -lim1, lim1)
    b1 = jax.random.uniform(k2, (hidden,), dtype, -lim1, lim1)
    w2 = jax.random.uniform(k3, (hidden, fout), dtype, -lim2, lim2)
    b2 = jax.random.uniform(k4, (fout,), dtype, -lim2, lim2)
    return w1, b1, w2, b2


def _ref_forward(x, w1, b1, w2, b2):
    """Plain-JAX reference: same math as the wrapped nn.Sequential."""
    return jnp.maximum(x @ w1 + b1.reshape(1, -1), 0.0) @ w2 + b2.reshape(1, -1)


if __name__ == "__main__":
    key = jax.random.PRNGKey(0)
    kx, kp, kx2, kp2 = jax.random.split(key, 4)

    # Case 1: small MLP -- single hidden chunk, single (or 2 on v7x) batch tile(s),
    # no padding emitted anywhere in the hot path.
    batch, fin, hidden, fout = 8, 32, 64, 16
    x = jax.random.normal(kx, (batch, fin), jnp.float32)
    params = _init_params(kp, fin, hidden, fout)
    y = jax.block_until_ready(jax.jit(neural_model_forward)(x, *params))
    ref = _ref_forward(x, *params)
    assert y.shape == (batch, fout)
    assert jnp.allclose(y, ref, atol=1e-5, rtol=1e-5), float(jnp.max(jnp.abs(y - ref)))

    # Case 2: exercise the hidden-chunked accumulator path (2 H chunks) and a ragged
    # batch (pad-only-the-remainder path).
    batch2, fin2, hidden2, fout2 = 20, 32, 256, 16
    x2 = jax.random.normal(kx2, (batch2, fin2), jnp.float32)
    params2 = _init_params(kp2, fin2, hidden2, fout2)
    fwd2 = jax.jit(functools.partial(neural_model_forward, hidden_chunk=128))
    y2 = jax.block_until_ready(fwd2(x2, *params2))
    ref2 = _ref_forward(x2, *params2)
    assert y2.shape == (batch2, fout2)
    assert jnp.allclose(y2, ref2, atol=1e-4, rtol=1e-4), float(jnp.max(jnp.abs(y2 - ref2)))

    # TODO(synk): NeuralModel's abstract methods (invert, save, get_in/out/latent_features,
    # get_modules, log_size) have no tensor-compute semantics and are not kernels.
    print("KERNEL_OK")
</pallas_src>

<mosaic_0001>
module attributes {stable_mosaic.version = 11 : i64} {
  func.func @_mlp_kernel(%arg0: i32, %arg1: i32, %arg2: memref<8x32xf32, #tpu.memory_space<vmem>>, %arg3: memref<32x64xf32, #tpu.memory_space<vmem>>, %arg4: memref<1x64xf32, #tpu.memory_space<vmem>>, %arg5: memref<64x16xf32, #tpu.memory_space<vmem>>, %arg6: memref<1x16xf32, #tpu.memory_space<vmem>>, %arg7: memref<8x16xf32, #tpu.memory_space<vmem>>, %arg8: memref<8x16xf32, #tpu.memory_space<vmem>>) attributes {dimension_semantics = [#tpu.dimension_semantics<parallel>, #tpu.dimension_semantics<arbitrary>], iteration_bounds = array<i64: 1, 1>, scalar_prefetch = 0 : i64, scratch_operands = 1 : i64, tpu.core_type = #tpu.core_type<tc>, window_params = [{transform_indices = @transform_0, window_bounds = array<i64: 8, 32>}, {transform_indices = @transform_1, window_bounds = array<i64: 32, 64>}, {transform_indices = @transform_2, window_bounds = array<i64: 1, 64>}, {transform_indices = @transform_3, window_bounds = array<i64: 64, 16>}, {pipeline_mode = #tpu.pipeline_mode<synchronous>, transform_indices = @transform_4, window_bounds = array<i64: 1, 16>}, {transform_indices = @transform_5, window_bounds = array<i64: 8, 16>}]} {
    %c0_i32 = arith.constant 0 : i32
    %0 = arith.cmpi eq, %arg1, %c0_i32 : i32
    %1 = arith.extui %0 : i1 to i32
    %c0_i32_0 = arith.constant 0 : i32
    %2 = arith.cmpi ne, %1, %c0_i32_0 : i32
    scf.if %2 {
      %cst_16 = arith.constant 0.000000e+00 : f32
      %19 = vector.broadcast %cst_16 : f32 to vector<8x16xf32>
      %c0_17 = arith.constant 0 : index
      %c0_18 = arith.constant 0 : index
      %20 = vector.load %arg8[%c0_17, %c0_18] : memref<8x16xf32, #tpu.memory_space<vmem>>, vector<8x16xf32>
      tpu.vector_store %arg8[%c0_17, %c0_18], %19 {strides = array<i32>} : memref<8x16xf32, #tpu.memory_space<vmem>>, vector<8x16xf32>,
    } else {
    }
    %c0 = arith.constant 0 : index
    %c0_1 = arith.constant 0 : index
    %3 = vector.load %arg2[%c0, %c0_1] : memref<8x32xf32, #tpu.memory_space<vmem>>, vector<8x32xf32>
    %c0_2 = arith.constant 0 : index
    %c0_3 = arith.constant 0 : index
    %4 = vector.load %arg3[%c0_2, %c0_3] : memref<32x64xf32, #tpu.memory_space<vmem>>, vector<32x64xf32>
    %cst = arith.constant dense<0.000000e+00> : vector<8x64xf32>
    %5 = tpu.matmul %3, %4, %cst {dimension_numbers = #tpu.dot_dimension_numbers<[1], [0], [0], [1], [0, 0, 1, 1], [], []>} : vector<8x32xf32>, vector<32x64xf32>, vector<8x64xf32> -> vector<8x64xf32>
    %c0_4 = arith.constant 0 : index
    %c0_5 = arith.constant 0 : index
    %6 = vector.load %arg4[%c0_4, %c0_5] : memref<1x64xf32, #tpu.memory_space<vmem>>, vector<1x64xf32>
    %7 = vector.broadcast %6 : vector<1x64xf32> to vector<8x64xf32>
    %8 = arith.addf %5, %7 : vector<8x64xf32>
    %cst_6 = arith.constant 0.000000e+00 : f32
    %9 = vector.broadcast %cst_6 : f32 to vector<8x64xf32>
    %10 = arith.maximumf %8, %9 : vector<8x64xf32>
    %c0_7 = arith.constant 0 : index
    %c0_8 = arith.constant 0 : index
    %11 = vector.load %arg8[%c0_7, %c0_8] : memref<8x16xf32, #tpu.memory_space<vmem>>, vector<8x16xf32>
    %c0_9 = arith.constant 0 : index
    %c0_10 = arith.constant 0 : index
    %12 = vector.load %arg5[%c0_9, %c0_10] : memref<64x16xf32, #tpu.memory_space<vmem>>, vector<64x16xf32>
    %cst_11 = arith.constant dense<0.000000e+00> : vector<8x16xf32>
    %13 = tpu.matmul %10, %12, %cst_11 {dimension_numbers = #tpu.dot_dimension_numbers<[1], [0], [0], [1], [0, 0, 1, 1], [], []>} : vector<8x64xf32>, vector<64x16xf32>, vector<8x16xf32> -> vector<8x16xf32>
    %14 = arith.addf %11, %13 : vector<8x16xf32>
    %c0_12 = arith.constant 0 : index
    %c0_13 = arith.constant 0 : index
    %15 = vector.load %arg8[%c0_12, %c0_13] : memref<8x16xf32, #tpu.memory_space<vmem>>, vector<8x16xf32>
    tpu.vector_store %arg8[%c0_12, %c0_13], %14 {strides = array<i32>} : memref<8x16xf32, #tpu.memory_space<vmem>>, vector<8x16xf32>,
    %c0_i32_14 = arith.constant 0 : i32
    %16 = arith.cmpi eq, %arg1, %c0_i32_14 : i32
    %17 = arith.extui %16 : i1 to i32
    %c0_i32_15 = arith.constant 0 : i32
    %18 = arith.cmpi ne, %17, %c0_i32_15 : i32
    scf.if %18 {
      %c0_16 = arith.constant 0 : index
      %c0_17 = arith.constant 0 : index
      %19 = vector.load %arg8[%c0_16, %c0_17] : memref<8x16xf32, #tpu.memory_space<vmem>>, vector<8x16xf32>
      %c0_18 = arith.constant 0 : index
      %c0_19 = arith.constant 0 : index
      %20 = vector.load %arg6[%c0_18, %c0_19] : memref<1x16xf32, #tpu.memory_space<vmem>>, vector<1x16xf32>
      %21 = vector.broadcast %20 : vector<1x16xf32> to vector<8x16xf32>
      %22 = arith.addf %19, %21 : vector<8x16xf32>
      %c0_20 = arith.constant 0 : index
      %c0_21 = arith.constant 0 : index
      %23 = vector.load %arg7[%c0_20, %c0_21] : memref<8x16xf32, #tpu.memory_space<vmem>>, vector<8x16xf32>
      tpu.vector_store %arg7[%c0_20, %c0_21], %22 {strides = array<i32>} : memref<8x16xf32, #tpu.memory_space<vmem>>, vector<8x16xf32>,
    } else {
    }
    return
  }
  func.func @transform_0(%arg0: i32, %arg1: i32) -> (i32, i32) {
    %c0_i32 = arith.constant 0 : i32
    %c0_i32_0 = arith.constant 0 : i32
    return %arg0, %c0_i32 : i32, i32
  }
  func.func @transform_1(%arg0: i32, %arg1: i32) -> (i32, i32) {
    %c0_i32 = arith.constant 0 : i32
    %c0_i32_0 = arith.constant 0 : i32
    return %c0_i32, %arg1 : i32, i32
  }
  func.func @transform_2(%arg0: i32, %arg1: i32) -> (i32, i32) {
    %c0_i32 = arith.constant 0 : i32
    %c0_i32_0 = arith.constant 0 : i32
    return %c0_i32, %arg1 : i32, i32
  }
  func.func @transform_3(%arg0: i32, %arg1: i32) -> (i32, i32) {
    %c0_i32 = arith.constant 0 : i32
    %c0_i32_0 = arith.constant 0 : i32
    return %arg1, %c0_i32 : i32, i32
  }
  func.func @transform_4(%arg0: i32, %arg1: i32) -> (i32, i32) {
    %c0_i32 = arith.constant 0 : i32
    %c0_i32_0 = arith.constant 0 : i32
    %c0_i32_1 = arith.constant 0 : i32
    return %c0_i32, %c0_i32_0 : i32, i32
  }
  func.func @transform_5(%arg0: i32, %arg1: i32) -> (i32, i32) {
    %c0_i32 = arith.constant 0 : i32
    %c0_i32_0 = arith.constant 0 : i32
    return %arg0, %c0_i32 : i32, i32
  }
}

</mosaic_0001>

<llo_original>
// kernel: neural_model_forward.1
$region0: #{neural_model_forward.1}
  #allocation0 [shape = 'u32[]', space=smem, size = 0x4, offset = 0x4, fixed_abs, tag = 'smem constant byte address 0x4 - core index']
  #allocation1 [shape = 'u32[144,128]{1,0:T(1,128)}', space=vmem, size = 0x12000, scoped, tag = 'internal scratch']
  #allocation2 [shape = 'f32[8,16]{1,0:T(8,128)}', space=vmem, size = 0x1000, scoped, tag = 'scratch operand']
  %s0 = inlined_call_operand.vmem [shape: f32[8,32], index: 0, kind: input, shape index: {}]
  %s1 = inlined_call_operand.vmem [shape: f32[32,64], index: 1, kind: input, shape index: {}]
  %s2 = inlined_call_operand.vmem [shape: f32[1,64], index: 2, kind: input, shape index: {}]
  %s3 = inlined_call_operand.vmem [shape: f32[64,16], index: 3, kind: input, shape index: {}]
  %s4 = inlined_call_operand.vmem [shape: f32[1,16], index: 4, kind: input, shape index: {}]
  %s5 = inlined_call_operand.hbm [shape: f32[8,16], index: 5, kind: output, shape index: {}]
  %s6 = sld [smem:[#allocation0]]
  $region38: #{neural_model_forward.1} parent=0
    _
  %s8 = ssub.s32 1, %s6
  %s9 = scalar_select 0, %s8, %s6
  $region1: #{neural_model_forward.1} parent=0
    #allocation3 [shape = 'u8[4096]{0}', space=vmem, size = 0x1000, scoped, tag = 'output window, operand 0, single buffered']
    #allocation4 [shape = 's32[1]{0}', space=sflag, size = 0x4, scoped, tag = 'scoped memory for neural_model_forward.1']
    %10 = vsyncpa [#allocation4], 0
    // Predicated region
    $region2: #{neural_model_forward.1} parent=1 // pred_check
      _
    $region3: #{neural_model_forward.1} parent=1 // pred_check_branch
      %12 = sbr.rel (0) target = $region5
    $region4: #{neural_model_forward.1} parent=1 // pred_region
      _
    $region5: #{neural_model_forward.1} parent=1 // pred_fallthru
      _
    // Predicated region
    $region6: #{neural_model_forward.1} parent=1 // pred_check
      _
    $region7: #{neural_model_forward.1} parent=1 // pred_check_branch
      %14 = sbr.rel (0) target = $region9
    $region8: #{neural_model_forward.1} parent=1 // pred_region
      _
    $region9: #{neural_model_forward.1} parent=1 // pred_fallthru
      _
    // Predicated region
    $region10: #{neural_model_forward.1} parent=1 // pred_check
      _
    $region11: #{neural_model_forward.1} parent=1 // pred_check_branch
      %16 = sbr.rel (0) target = $region13
    $region12: #{neural_model_forward.1} parent=1 // pred_region
      _
    $region13: #{neural_model_forward.1} parent=1 // pred_fallthru
      _
    // Predicated region
    $region14: #{neural_model_forward.1} parent=1 // pred_check
      _
    $region15: #{neural_model_forward.1} parent=1 // pred_check_branch
      %18 = sbr.rel (0) target = $region17
    $region16: #{neural_model_forward.1} parent=1 // pred_region
      _
    $region17: #{neural_model_forward.1} parent=1 // pred_fallthru
      _
    // Predicated region
    $region18: #{neural_model_forward.1} parent=1 // pred_check
      _
    $region19: #{neural_model_forward.1} parent=1 // pred_check_branch
      %20 = sbr.rel (0) target = $region21
    $region20: #{neural_model_forward.1} parent=1 // pred_region
      _
    $region21: #{neural_model_forward.1} parent=1 // pred_fallthru
      _
    %p21 = scmp.eq.s32.totalorder 0, 0
    // Predicated region
    $region22: #{neural_model_forward.1} parent=1 // pred_check
      %p22 = pneg %p21
    $region23: #{neural_model_forward.1} parent=1 // pred_check_branch
      %24 = sbr.rel (%p22) target = $region25
    $region24: #{neural_model_forward.1} parent=1 // pred_region
      %vm25 = vcmask 130048
      %26 = vst.msk [vmem:[#allocation2] sm:$0xff] %vm25, 0.0
    $region25: #{neural_model_forward.1} parent=1 // pred_fallthru
      _
    %v27 = vld [vmem:[%s0] sm:$0xff]
    %v28 = vld [vmem:[%s1] sm:$0xff]
    %v29 = vld [vmem:[%s1 + $0x8] sm:$0xff]
    %v30 = vld [vmem:[%s1 + $0x10] sm:$0xff]
    %v31 = vld [vmem:[%s1 + $0x18] sm:$0xff]
    %v32 = vld [vmem:[%s2] sm:$0x1]
    %v34 = vlaneseq
    %v35 = vshrl.u32 %v34, 7
    %v36 = vsub.s32 0, %v35
    %v37 = vrot.slane %v32, %v36
    %vm39 = vcmask 261120
    %v41 = vsel %vm39, %v27, 0
    %43 = vmatprep.subr.mxu0 0.0
    %44 = vmatpush1.msra.mxu0 %v28
    %45 = vmatprep.subr.mxu0 0.0
    %46 = vmatpush1.msra.mxu0 %v29
    %47 = vmatprep.subr.mxu0 0.0
    %48 = vmatpush1.msra.mxu0 %v30
    %49 = vmatprep.subr.mxu0 0.0
    %50 = vmatpush1.msra.mxu0 %v31
    %51 = vmatprep.subr.mxu0 0.0
    %52 = vmatpush1.msra.mxu0 0.0
    %53 = vmatprep.subr.mxu0 0.0
    %54 = vmatpush1.msra.mxu0 0.0
    %55 = vmatprep.subr.mxu0 0.0
    %56 = vmatpush1.msra.mxu0 0.0
    %57 = vmatprep.subr.mxu0 0.0
    %58 = vmatpush1.msra.mxu0 0.0
    %59 = vmatprep.subr.mxu0 0.0
    %60 = vmatpush1.msra.mxu0 0.0
    %61 = vmatprep.subr.mxu0 0.0
    %62 = vmatpush1.msra.mxu0 0.0
    %63 = vmatprep.subr.mxu0 0.0
    %64 = vmatpush1.msra.mxu0 0.0
    %65 = vmatprep.subr.mxu0 0.0
    %66 = vmatpush1.msra.mxu0 0.0
    %67 = vmatprep.subr.mxu0 0.0
    %68 = vmatpush1.msra.mxu0 0.0
    %69 = vmatprep.subr.mxu0 0.0
    %70 = vmatpush1.msra.mxu0 0.0
    %71 = vmatprep.subr.mxu0 0.0
    %72 = vmatpush1.msra.mxu0 0.0
    %73 = vmatprep.subr.mxu0 0.0
    %74 = vmatpush1.msra.mxu0 0.0
    %75 = vmatprep.subr.mxu0 0.0
    %76 = vmatpush1.msra.mxu0 0.0
    %77 = vmatprep.subr.mxu0 0.0
    %78 = vmatpush1.msra.mxu0 0.0
    %79 = vmatprep.subr.mxu0 0.0
    %80 = vmatpush1.msra.mxu0 0.0
    %81 = vmatprep.subr.mxu0 0.0
    %82 = vmatpush1.msra.mxu0 0.0
    %83 = vmatprep.subr.mxu0 0.0
    %84 = vmatpush1.msra.mxu0 0.0
    %85 = vmatprep.subr.mxu0 0.0
    %86 = vmatpush1.msra.mxu0 0.0
    %87 = vmatprep.subr.mxu0 0.0
    %88 = vmatpush1.msra.mxu0 0.0
    %89 = vmatprep.subr.mxu0 0.0
    %90 = vmatpush1.msra.mxu0 0.0
    %91 = vmatprep.subr.mxu0 0.0
    %92 = vmatpush1.msra.mxu0 0.0
    %93 = vmatprep.subr.mxu0 0.0
    %94 = vmatpush1.msra.mxu0 0.0
    %95 = vmatprep.subr.mxu0 0.0
    %96 = vmatpush1.msra.mxu0 0.0
    %97 = vmatprep.subr.mxu0 0.0
    %98 = vmatpush1.msra.mxu0 0.0
    %99 = vmatprep.subr.mxu0 0.0
    %100 = vmatpush1.msra.mxu0 0.0
    %101 = vmatprep.subr.mxu0 0.0
    %102 = vmatpush1.msra.mxu0 0.0
    %103 = vmatprep.subr.mxu0 0.0
    %104 = vmatpush1.msra.mxu0 0.0
    %105 = vmatprep.subr.mxu0 0.0
    %106 = vmatpush1.msra.mxu0 0.0
    %107 = vmatprep.mubr.f32.mxu0 0.0
    %108 = vmatmul.mubr.f32.gmra.mrb[0].mxu0 %v41
    %v109 = vpop.f32.mrb[0].mxu0
    %v110 = vadd.f32 %v37, %v109
    %v111 = vpop.f32.mrb[0].mxu0
    %112 = vdwg.mxu0
    %v113 = vmax.f32 %v110, 0.0
    %v114 = vld [vmem:[#allocation2] sm:$0xff]
    %v115 = vld [vmem:[%s3] sm:$0xff]
    %v116 = vld [vmem:[%s3 + $0x8] sm:$0xff]
    %v117 = vld [vmem:[%s3 + $0x10] sm:$0xff]
    %v118 = vld [vmem:[%s3 + $0x18] sm:$0xff]
    %v119 = vld [vmem:[%s3 + $0x20] sm:$0xff]
    %v120 = vld [vmem:[%s3 + $0x28] sm:$0xff]
    %v121 = vld [vmem:[%s3 + $0x30] sm:$0xff]
    %v122 = vld [vmem:[%s3 + $0x38] sm:$0xff]
    %vm123 = vcmask 523264
    %v125 = vsel %vm123, %v113, 0
    %127 = vmatprep.subr.mxu0 0.0
    %128 = vmatpush1.msra.mxu0 %v115
    %129 = vmatprep.subr.mxu0 0.0
    %130 = vmatpush1.msra.mxu0 %v116
    %131 = vmatprep.subr.mxu0 0.0
    %132 = vmatpush1.msra.mxu0 %v117
    %133 = vmatprep.subr.mxu0 0.0
    %134 = vmatpush1.msra.mxu0 %v118
    %135 = vmatprep.subr.mxu0 0.0
    %136 = vmatpush1.msra.mxu0 %v119
    %137 = vmatprep.subr.mxu0 0.0
    %138 = vmatpush1.msra.mxu0 %v120
    %139 = vmatprep.subr.mxu0 0.0
    %140 = vmatpush1.msra.mxu0 %v121
    %141 = vmatprep.subr.mxu0 0.0
    %142 = vmatpush1.msra.mxu0 %v122
    %143 = vmatprep.subr.mxu0 0.0
    %144 = vmatpush1.msra.mxu0 0.0
    %145 = vmatprep.subr.mxu0 0.0
    %146 = vmatpush1.msra.mxu0 0.0
    %147 = vmatprep.subr.mxu0 0.0
    %148 = vmatpush1.msra.mxu0 0.0
    %149 = vmatprep.subr.mxu0 0.0
    %150 = vmatpush1.msra.mxu0 0.0
    %151 = vmatprep.subr.mxu0 0.0
    %152 = vmatpush1.msra.mxu0 0.0
    %153 = vmatprep.subr.mxu0 0.0
    %154 = vmatpush1.msra.mxu0 0.0
    %155 = vmatprep.subr.mxu0 0.0
    %156 = vmatpush1.msra.mxu0 0.0
    %157 = vmatprep.subr.mxu0 0.0
    %158 = vmatpush1.msra.mxu0 0.0
    %159 = vmatprep.subr.mxu0 0.0
    %160 = vmatpush1.msra.mxu0 0.0
    %161 = vmatprep.subr.mxu0 0.0
    %162 = vmatpush1.msra.mxu0 0.0
    %163 = vmatprep.subr.mxu0 0.0
    %164 = vmatpush1.msra.mxu0 0.0
    %165 = vmatprep.subr.mxu0 0.0
    %166 = vmatpush1.msra.mxu0 0.0
    %167 = vmatprep.subr.mxu0 0.0
    %168 = vmatpush1.msra.mxu0 0.0
    %169 = vmatprep.subr.mxu0 0.0
    %170 = vmatpush1.msra.mxu0 0.0
    %171 = vmatprep.subr.mxu0 0.0
    %172 = vmatpush1.msra.mxu0 0.0
    %173 = vmatprep.subr.mxu0 0.0
    %174 = vmatpush1.msra.mxu0 0.0
    %175 = vmatprep.subr.mxu0 0.0
    %176 = vmatpush1.msra.mxu0 0.0
    %177 = vmatprep.subr.mxu0 0.0
    %178 = vmatpush1.msra.mxu0 0.0
    %179 = vmatprep.subr.mxu0 0.0
    %180 = vmatpush1.msra.mxu0 0.0
    %181 = vmatprep.subr.mxu0 0.0
    %182 = vmatpush1.msra.mxu0 0.0
    %183 = vmatprep.subr.mxu0 0.0
    %184 = vmatpush1.msra.mxu0 0.0
    %185 = vmatprep.subr.mxu0 0.0
    %186 = vmatpush1.msra.mxu0 0.0
    %187 = vmatprep.subr.mxu0 0.0
    %188 = vmatpush1.msra.mxu0 0.0
    %189 = vmatprep.subr.mxu0 0.0
    %190 = vmatpush1.msra.mxu0 0.0
    %191 = vmatprep.mubr.f32.mxu0 0.0
    %192 = vmatmul.mubr.f32.gmra.mrb[0].mxu0 %v125
    %v193 = vpop.f32.mrb[0].mxu0
    %v194 = vadd.f32 0.0, %v193
    %v195 = vpop.f32.mrb[0].mxu0
    %196 = vdwg.mxu0
    %v197 = vadd.f32 %v114, %v194
    %vm198 = vcmask 130048
    %199 = vst.msk [vmem:[#allocation2] sm:$0xff] %vm198, %v197
    // Predicated region
    $region26: #{neural_model_forward.1} parent=1 // pred_check
      %p200 = pneg %p21
    $region27: #{neural_model_forward.1} parent=1 // pred_check_branch
      %202 = sbr.rel (%p200) target = $region29
    $region28: #{neural_model_forward.1} parent=1 // pred_region
      %v203 = vld [vmem:[#allocation2] sm:$0xff]
      %v204 = vld [vmem:[%s4] sm:$0x1]
      %v206 = vlaneseq
      %v207 = vshrl.u32 %v206, 7
      %v208 = vsub.s32 0, %v207
      %v209 = vrot.slane %v204, %v208
      %v211 = vadd.f32 %v203, %v209
      %212 = vst.msk [vmem:[#allocation3] sm:$0xff] %vm198, %v211
    $region29: #{neural_model_forward.1} parent=1 // pred_fallthru
      _
    // Predicated region
    $region30: #{neural_model_forward.1} parent=1 // pred_check
      _
    $region31: #{neural_model_forward.1} parent=1 // pred_check_branch
      %214 = sbr.rel (0) target = $region33
    $region32: #{neural_model_forward.1} parent=1 // pred_region
      %s216 = ssub.s32 128, 128
      %217 = vsyncadd [#allocation4], %s216
      %s219 = sshll.u32 [#allocation3], 4
      %s220 = int_to_ptr.vmem [resolvable:$true] %s219
      %222 = dma.vmem_to_hbm [thread:$0]  %s220, 128, %s5, [#allocation4]
    $region33: #{neural_model_forward.1} parent=1 // pred_fallthru
      _
    // Predicated region
    $region34: #{neural_model_forward.1} parent=1 // pred_check
      _
    $region35: #{neural_model_forward.1} parent=1 // pred_check_branch
      %224 = sbr.rel (0) target = $region37
    $region36: #{neural_model_forward.1} parent=1 // pred_region
      %225 = dma.done [#allocation4], 128
    $region37: #{neural_model_forward.1} parent=1 // pred_fallthru
      _
    %226 = vsyncpa [#allocation4], 1

</llo_original>
